<compile_context>
chip_gen: v7x
topology: tpu7x:2x2x1
jax: 0.10.0
libtpu: 0.0.40
codegen_flags: <defaults>
</compile_context>

<pallas_src>
import jax
import jax.numpy as jnp
from jax.experimental import pallas as pl
from jax.experimental.pallas import tpu as pltpu

_EPS = 1e-12  # F.normalize default eps


# ----------------------------- kernels ------------------------------------ #

def _arcface_kernel(x_ref, w_ref, col_inv_ref, o_ref):
    # x_ref: (TM, E) pre-normalized rows; w_ref: (E, TN) raw (un-normalized) W.
    acc = jnp.dot(x_ref[...], w_ref[...], preferred_element_type=jnp.float32)
    o_ref[...] = acc * col_inv_ref[...]          # (TM,TN) * (1,TN) f32 epilogue


def _arcface_kernel_ktiled(x_ref, w_ref, col_inv_ref, o_ref, acc_ref):
    # Embedding (contraction) axis tiled; innermost grid axis, "arbitrary".
    k = pl.program_id(2)

    @pl.when(k == 0)
    def _():
        acc_ref[...] = jnp.zeros_like(acc_ref)

    acc_ref[...] += jnp.dot(x_ref[...], w_ref[...],
                            preferred_element_type=jnp.float32)

    @pl.when(k == pl.num_programs(2) - 1)
    def _():
        o_ref[...] = acc_ref[...] * col_inv_ref[...]


# ----------------------------- wrapper ------------------------------------ #

def _round_up(x, m):
    return ((x + m - 1) // m) * m


def _vmem_bytes(tm, tn, kdim, dot_bytes, ktiled):
    """Rough double-buffered per-step VMEM footprint."""
    w = 2 * kdim * tn * dot_bytes
    x = 2 * tm * kdim * dot_bytes
    o = 2 * tm * tn * 4
    c = 2 * tn * 4
    acc = tm * tn * 4 if ktiled else 0
    return w + x + o + c + acc


def _maybe_pad(a, shape):
    if a.shape == tuple(shape):
        return a
    return jnp.pad(a, [(0, t - s) for s, t in zip(a.shape, shape)])


def arcface_forward(x, W, *, tm=None, tn=None, tk=None,
                    dot_dtype=jnp.bfloat16,
                    vmem_budget_bytes=14 << 20):
    B, E = x.shape
    E2, C = W.shape
    assert E == E2, (E, E2)

    x = x.astype(jnp.float32)
    W = W.astype(jnp.float32)

    # Precompute normalization scales (outside the kernel).
    # rsqrt(max(||v||^2, eps^2)) == 1 / max(||v||, eps)  -> matches F.normalize.
    eps2 = jnp.float32(_EPS * _EPS)
    row_inv = jax.lax.rsqrt(
        jnp.maximum(jnp.sum(x * x, axis=1, keepdims=True), eps2))   # (B, 1)
    col_inv = jax.lax.rsqrt(
        jnp.maximum(jnp.sum(W * W, axis=0, keepdims=True), eps2))   # (1, C) f32
    x_n = (x * row_inv).astype(dot_dtype)                           # pre-normalized x
    w_s = W.astype(dot_dtype)                                       # bf16-streamed W

    dot_bytes = jnp.dtype(dot_dtype).itemsize
    # Sublane multiple for the batch tile respects packed-dtype tiling.
    sub_mult = 8 if dot_bytes >= 4 else (16 if dot_bytes == 2 else 32)

    if tm is None:
        # 256-row LHS fills the v6e/v7x 256-wide MXU; harmless (VMEM-checked) on v5e.
        tm = min(256, _round_up(B, sub_mult))
    if tn is None:
        tn = min(1024, _round_up(C, 256))

    # K-tiling of the embedding axis (multiples of 128).  Auto-enable only if
    # the un-tiled W tile would exceed the conservative VMEM budget.
    if tk is not None and tk >= E:
        tk = None
    if tk is None and _vmem_bytes(tm, tn, E, dot_bytes, False) > vmem_budget_bytes:
        tk = 512
        while _vmem_bytes(tm, tn, tk, dot_bytes, True) > vmem_budget_bytes and tk > 128:
            tk //= 2
    if tk is not None:
        assert tk % 128 == 0, "tk must be a multiple of 128"
    # Shrink the class tile if still over budget (protects v5e's 16 MiB scope).
    while (_vmem_bytes(tm, tn, tk or E, dot_bytes, tk is not None)
           > vmem_budget_bytes and tn > 256):
        tn //= 2

    # Zero-pad to tile multiples (zero rows/cols -> zero logits, sliced off).
    B_pad = _round_up(B, tm)
    C_pad = _round_up(C, tn)
    E_pad = _round_up(E, tk) if tk else E
    x_n = _maybe_pad(x_n, (B_pad, E_pad))
    w_s = _maybe_pad(w_s, (E_pad, C_pad))
    col_inv = _maybe_pad(col_inv, (1, C_pad))

    n_j = C_pad // tn          # class tiles (outer)
    n_i = B_pad // tm          # batch tiles (inner -> W not re-streamed)

    if tk is None:
        grid = (n_j, n_i)
        in_specs = [
            pl.BlockSpec((tm, E_pad), lambda j, i: (i, 0)),
            # Constant along the inner batch axis -> W DMA'd from HBM once.
            pl.BlockSpec((E_pad, tn), lambda j, i: (0, j)),
            pl.BlockSpec((1, tn), lambda j, i: (0, j)),
        ]
        out_spec = pl.BlockSpec((tm, tn), lambda j, i: (i, j))
        scratch = []
        kernel = _arcface_kernel
        dims = ("parallel", "parallel")
        w_reads, x_reads = 1, n_j
    else:
        n_k = E_pad // tk
        grid = (n_j, n_i, n_k)
        in_specs = [
            pl.BlockSpec((tm, tk), lambda j, i, k: (i, k)),
            pl.BlockSpec((tk, tn), lambda j, i, k: (k, j)),
            pl.BlockSpec((1, tn), lambda j, i, k: (0, j)),
        ]
        out_spec = pl.BlockSpec((tm, tn), lambda j, i, k: (i, j))
        scratch = [pltpu.VMEM((tm, tn), jnp.float32)]
        kernel = _arcface_kernel_ktiled
        dims = ("parallel", "parallel", "arbitrary")
        w_reads, x_reads = n_i, n_j

    cost = pl.CostEstimate(
        flops=2 * B_pad * E_pad * C_pad,
        transcendentals=0,
        bytes_accessed=(dot_bytes * (E_pad * C_pad * w_reads
                                     + B_pad * E_pad * x_reads)
                        + 4 * (B_pad * C_pad + C_pad)),
    )

    out = pl.pallas_call(
        kernel,
        out_shape=jax.ShapeDtypeStruct((B_pad, C_pad), jnp.float32),
        grid=grid,
        in_specs=in_specs,
        out_specs=out_spec,
        scratch_shapes=scratch,
        compiler_params=pltpu.CompilerParams(dimension_semantics=dims),
        cost_estimate=cost,
    )(x_n, w_s, col_inv)

    if (B_pad, C_pad) != (B, C):
        out = out[:B, :C]
    return out


# ------------------------------- demo -------------------------------------- #

def _xavier_uniform(key, shape, dtype=jnp.float32):
    # Deterministic Xavier/Glorot-uniform init to mirror nn.init.xavier_uniform_.
    fan_in, fan_out = shape
    limit = jnp.sqrt(6.0 / (fan_in + fan_out))
    return jax.random.uniform(key, shape, dtype, minval=-limit, maxval=limit)


def _reference(x, W):
    x_n = x / jnp.maximum(jnp.sqrt(jnp.sum(x * x, axis=1, keepdims=True)), _EPS)
    w_n = W / jnp.maximum(jnp.sqrt(jnp.sum(W * W, axis=0, keepdims=True)), _EPS)
    return x_n @ w_n


if __name__ == "__main__":
    key = jax.random.PRNGKey(0)
    k_x, k_w, k_x2, k_w2 = jax.random.split(key, 4)

    batch, embedding_size, num_classes = 16, 256, 512
    x = jax.random.normal(k_x, (batch, embedding_size), dtype=jnp.float32)
    W = _xavier_uniform(k_w, (embedding_size, num_classes))
    ref = _reference(x, W)

    # Default path: bf16-streamed operands, f32 accumulation, col_inv epilogue.
    logits = arcface_forward(x, W)
    jax.block_until_ready(logits)
    assert logits.shape == ref.shape
    err_bf16 = float(jnp.max(jnp.abs(logits - ref)))
    assert err_bf16 < 2e-2, err_bf16

    # f32 streaming path (structure exactness check).
    logits_f32 = arcface_forward(x, W, dot_dtype=jnp.float32)
    jax.block_until_ready(logits_f32)
    err_f32 = float(jnp.max(jnp.abs(logits_f32 - ref)))
    assert err_f32 < 2e-4, err_f32

    # K-tiled embedding axis (accumulator scratch + pl.when init/finalize).
    logits_kt = arcface_forward(x, W, tk=128)
    jax.block_until_ready(logits_kt)
    err_kt = float(jnp.max(jnp.abs(logits_kt - ref)))
    assert err_kt < 2e-2, err_kt

    # Non-divisible shapes exercise the zero-padding / slicing path.
    b2, e2, c2 = 13, 192, 500
    x2 = jax.random.normal(k_x2, (b2, e2), dtype=jnp.float32)
    W2 = _xavier_uniform(k_w2, (e2, c2))
    ref2 = _reference(x2, W2)
    logits2 = arcface_forward(x2, W2)
    jax.block_until_ready(logits2)
    assert logits2.shape == ref2.shape
    err_pad = float(jnp.max(jnp.abs(logits2 - ref2)))
    assert err_pad < 2e-2, err_pad

    print("KERNEL_OK")
</pallas_src>

<mosaic_0001>
module attributes {stable_mosaic.version = 11 : i64} {
  func.func @_arcface_kernel(%arg0: i32, %arg1: i32, %arg2: memref<16x256xbf16, #tpu.memory_space<vmem>>, %arg3: memref<256x512xbf16, #tpu.memory_space<vmem>>, %arg4: memref<1x512xf32, #tpu.memory_space<vmem>>, %arg5: memref<16x512xf32, #tpu.memory_space<vmem>>) attributes {dimension_semantics = [#tpu.dimension_semantics<parallel>, #tpu.dimension_semantics<parallel>], iteration_bounds = array<i64: 1, 1>, scalar_prefetch = 0 : i64, scratch_operands = 0 : i64, tpu.core_type = #tpu.core_type<tc>, window_params = [{transform_indices = @transform_0, window_bounds = array<i64: 16, 256>}, {transform_indices = @transform_1, window_bounds = array<i64: 256, 512>}, {transform_indices = @transform_2, window_bounds = array<i64: 1, 512>}, {transform_indices = @transform_3, window_bounds = array<i64: 16, 512>}]} {
    %c0 = arith.constant 0 : index
    %c0_0 = arith.constant 0 : index
    %0 = vector.load %arg2[%c0, %c0_0] : memref<16x256xbf16, #tpu.memory_space<vmem>>, vector<16x256xbf16>
    %c0_1 = arith.constant 0 : index
    %c0_2 = arith.constant 0 : index
    %1 = vector.load %arg3[%c0_1, %c0_2] : memref<256x512xbf16, #tpu.memory_space<vmem>>, vector<256x512xbf16>
    %cst = arith.constant dense<0.000000e+00> : vector<16x512xf32>
    %2 = tpu.matmul %0, %1, %cst {dimension_numbers = #tpu.dot_dimension_numbers<[1], [0], [0], [1], [0, 0, 1, 1], [], []>} : vector<16x256xbf16>, vector<256x512xbf16>, vector<16x512xf32> -> vector<16x512xf32>
    %c0_3 = arith.constant 0 : index
    %c0_4 = arith.constant 0 : index
    %3 = vector.load %arg4[%c0_3, %c0_4] : memref<1x512xf32, #tpu.memory_space<vmem>>, vector<1x512xf32>
    %4 = vector.broadcast %3 : vector<1x512xf32> to vector<16x512xf32>
    %5 = arith.mulf %2, %4 : vector<16x512xf32>
    %c0_5 = arith.constant 0 : index
    %c0_6 = arith.constant 0 : index
    %6 = vector.load %arg5[%c0_5, %c0_6] : memref<16x512xf32, #tpu.memory_space<vmem>>, vector<16x512xf32>
    tpu.vector_store %arg5[%c0_5, %c0_6], %5 {strides = array<i32>} : memref<16x512xf32, #tpu.memory_space<vmem>>, vector<16x512xf32>,
    return
  }
  func.func @transform_0(%arg0: i32, %arg1: i32) -> (i32, i32) {
    %c0_i32 = arith.constant 0 : i32
    %c0_i32_0 = arith.constant 0 : i32
    return %arg1, %c0_i32 : i32, i32
  }
  func.func @transform_1(%arg0: i32, %arg1: i32) -> (i32, i32) {
    %c0_i32 = arith.constant 0 : i32
    %c0_i32_0 = arith.constant 0 : i32
    return %c0_i32, %arg0 : i32, i32
  }
  func.func @transform_2(%arg0: i32, %arg1: i32) -> (i32, i32) {
    %c0_i32 = arith.constant 0 : i32
    %c0_i32_0 = arith.constant 0 : i32
    return %c0_i32, %arg0 : i32, i32
  }
  func.func @transform_3(%arg0: i32, %arg1: i32) -> (i32, i32) {
    %c0_i32 = arith.constant 0 : i32
    return %arg1, %arg0 : i32, i32
  }
}

</mosaic_0001>

<llo_original>
// kernel: tpu_custom_call.1
$region0: #{tpu_custom_call.1}
  #allocation0 [shape = 'u32[]', space=smem, size = 0x4, offset = 0x4, fixed_abs, tag = 'smem constant byte address 0x4 - core index']
  #allocation1 [shape = 'u32[144,128]{1,0:T(1,128)}', space=vmem, size = 0x12000, scoped, tag = 'internal scratch']
  %s0 = inlined_call_operand.hbm [shape: bf16[16,256], index: 0, kind: input, shape index: {}]
  %s1 = inlined_call_operand.hbm [shape: bf16[256,512], index: 1, kind: input, shape index: {}]
  %s2 = inlined_call_operand.vmem [shape: f32[1,512], index: 2, kind: input, shape index: {}]
  %s3 = inlined_call_operand.hbm [shape: f32[16,512], index: 3, kind: output, shape index: {}]
  %s4 = sld [smem:[#allocation0]]
  $region30: #{tpu_custom_call.1} parent=0
    _
  %s6 = ssub.s32 1, %s4
  %s7 = scalar_select 0, %s6, %s4
  $region1: #{tpu_custom_call.1} parent=0
    #allocation2 [shape = 'u8[8192]{0}', space=vmem, size = 0x2000, scoped, tag = 'input window, operand 0, single buffered']
    #allocation3 [shape = 's32[1]{0}', space=sflag, size = 0x4, scoped, tag = 'scoped memory for tpu_custom_call.1']
    #allocation4 [shape = 's32[1]{0}', space=sflag, size = 0x4, scoped, tag = 'scoped memory for tpu_custom_call.1']
    #allocation5 [shape = 'u8[262144]{0}', space=vmem, size = 0x40000, scoped, tag = 'input window, operand 1, single buffered']
    #allocation6 [shape = 's32[1]{0}', space=sflag, size = 0x4, scoped, tag = 'scoped memory for tpu_custom_call.1']
    #allocation7 [shape = 'u8[32768]{0}', space=vmem, size = 0x8000, scoped, tag = 'output window, operand 0, single buffered']
    %8 = vsyncpa [#allocation3], 0
    %9 = vsyncpa [#allocation6], 0
    %10 = vsyncpa [#allocation4], 0
    // Predicated region
    $region2: #{tpu_custom_call.1} parent=1 // pred_check
      _
    $region3: #{tpu_custom_call.1} parent=1 // pred_check_branch
      %12 = sbr.rel (0) target = $region5
    $region4: #{tpu_custom_call.1} parent=1 // pred_region
      %s14 = ssub.s32 256, 256
      %15 = vsyncadd [#allocation3], %s14
      %s16 = sshll.u32 [#allocation2], 4
      %s17 = int_to_ptr.vmem [resolvable:$true] %s16
      %22 = dma.hbm_to_vmem [thread:$0]  %s0, 256, %s17, [#allocation3], 128, 128, 8
    $region5: #{tpu_custom_call.1} parent=1 // pred_fallthru
      _
    // Predicated region
    $region6: #{tpu_custom_call.1} parent=1 // pred_check
      _
    $region7: #{tpu_custom_call.1} parent=1 // pred_check_branch
      %24 = sbr.rel (0) target = $region9
    $region8: #{tpu_custom_call.1} parent=1 // pred_region
      %s26 = ssub.s32 8192, 8192
      %27 = vsyncadd [#allocation6], %s26
      %s28 = sshll.u32 [#allocation5], 4
      %s29 = int_to_ptr.vmem [resolvable:$true] %s28
      %34 = dma.hbm_to_vmem [thread:$0]  %s1, 8192, %s29, [#allocation6], 256, 256, 16
    $region9: #{tpu_custom_call.1} parent=1 // pred_fallthru
      _
    // Predicated region
    $region10: #{tpu_custom_call.1} parent=1 // pred_check
      _
    $region11: #{tpu_custom_call.1} parent=1 // pred_check_branch
      %36 = sbr.rel (0) target = $region13
    $region12: #{tpu_custom_call.1} parent=1 // pred_region
      _
    $region13: #{tpu_custom_call.1} parent=1 // pred_fallthru
      _
    // Predicated region
    $region14: #{tpu_custom_call.1} parent=1 // pred_check
      _
    $region15: #{tpu_custom_call.1} parent=1 // pred_check_branch
      %38 = sbr.rel (0) target = $region17
    $region16: #{tpu_custom_call.1} parent=1 // pred_region
      %39 = dma.done [#allocation3], 256
    $region17: #{tpu_custom_call.1} parent=1 // pred_fallthru
      _
    // Predicated region
    $region18: #{tpu_custom_call.1} parent=1 // pred_check
      _
    $region19: #{tpu_custom_call.1} parent=1 // pred_check_branch
      %41 = sbr.rel (0) target = $region21
    $region20: #{tpu_custom_call.1} parent=1 // pred_region
      %42 = dma.done [#allocation6], 8192
    $region21: #{tpu_custom_call.1} parent=1 // pred_fallthru
      _
    %v43 = vld [vmem:[#allocation2] sm:$0xff]
    %v44 = vld [vmem:[#allocation2 + $0x8] sm:$0xff]
    %v45 = vld [vmem:[#allocation5] sm:$0xff]
    %v46 = vld [vmem:[#allocation5 + $0x8] sm:$0xff]
    %v47 = vld [vmem:[#allocation5 + $0x10] sm:$0xff]
    %v48 = vld [vmem:[#allocation5 + $0x18] sm:$0xff]
    %v49 = vld [vmem:[#allocation5 + $0x20] sm:$0xff]
    %v50 = vld [vmem:[#allocation5 + $0x28] sm:$0xff]
    %v51 = vld [vmem:[#allocation5 + $0x30] sm:$0xff]
    %v52 = vld [vmem:[#allocation5 + $0x38] sm:$0xff]
    %v53 = vld [vmem:[#allocation5 + $0x40] sm:$0xff]
    %v54 = vld [vmem:[#allocation5 + $0x48] sm:$0xff]
    %v55 = vld [vmem:[#allocation5 + $0x50] sm:$0xff]
    %v56 = vld [vmem:[#allocation5 + $0x58] sm:$0xff]
    %v57 = vld [vmem:[#allocation5 + $0x60] sm:$0xff]
    %v58 = vld [vmem:[#allocation5 + $0x68] sm:$0xff]
    %v59 = vld [vmem:[#allocation5 + $0x70] sm:$0xff]
    %v60 = vld [vmem:[#allocation5 + $0x78] sm:$0xff]
    %v61 = vld [vmem:[#allocation5 + $0x80] sm:$0xff]
    %v62 = vld [vmem:[#allocation5 + $0x88] sm:$0xff]
    %v63 = vld [vmem:[#allocation5 + $0x90] sm:$0xff]
    %v64 = vld [vmem:[#allocation5 + $0x98] sm:$0xff]
    %v65 = vld [vmem:[#allocation5 + $0xa0] sm:$0xff]
    %v66 = vld [vmem:[#allocation5 + $0xa8] sm:$0xff]
    %v67 = vld [vmem:[#allocation5 + $0xb0] sm:$0xff]
    %v68 = vld [vmem:[#allocation5 + $0xb8] sm:$0xff]
    %v69 = vld [vmem:[#allocation5 + $0xc0] sm:$0xff]
    %v70 = vld [vmem:[#allocation5 + $0xc8] sm:$0xff]
    %v71 = vld [vmem:[#allocation5 + $0xd0] sm:$0xff]
    %v72 = vld [vmem:[#allocation5 + $0xd8] sm:$0xff]
    %v73 = vld [vmem:[#allocation5 + $0xe0] sm:$0xff]
    %v74 = vld [vmem:[#allocation5 + $0xe8] sm:$0xff]
    %v75 = vld [vmem:[#allocation5 + $0xf0] sm:$0xff]
    %v76 = vld [vmem:[#allocation5 + $0xf8] sm:$0xff]
    %v77 = vld [vmem:[#allocation5 + $0x100] sm:$0xff]
    %v78 = vld [vmem:[#allocation5 + $0x108] sm:$0xff]
    %v79 = vld [vmem:[#allocation5 + $0x110] sm:$0xff]
    %v80 = vld [vmem:[#allocation5 + $0x118] sm:$0xff]
    %v81 = vld [vmem:[#allocation5 + $0x120] sm:$0xff]
    %v82 = vld [vmem:[#allocation5 + $0x128] sm:$0xff]
    %v83 = vld [vmem:[#allocation5 + $0x130] sm:$0xff]
    %v84 = vld [vmem:[#allocation5 + $0x138] sm:$0xff]
    %v85 = vld [vmem:[#allocation5 + $0x140] sm:$0xff]
    %v86 = vld [vmem:[#allocation5 + $0x148] sm:$0xff]
    %v87 = vld [vmem:[#allocation5 + $0x150] sm:$0xff]
    %v88 = vld [vmem:[#allocation5 + $0x158] sm:$0xff]
    %v89 = vld [vmem:[#allocation5 + $0x160] sm:$0xff]
    %v90 = vld [vmem:[#allocation5 + $0x168] sm:$0xff]
    %v91 = vld [vmem:[#allocation5 + $0x170] sm:$0xff]
    %v92 = vld [vmem:[#allocation5 + $0x178] sm:$0xff]
    %v93 = vld [vmem:[#allocation5 + $0x180] sm:$0xff]
    %v94 = vld [vmem:[#allocation5 + $0x188] sm:$0xff]
    %v95 = vld [vmem:[#allocation5 + $0x190] sm:$0xff]
    %v96 = vld [vmem:[#allocation5 + $0x198] sm:$0xff]
    %v97 = vld [vmem:[#allocation5 + $0x1a0] sm:$0xff]
    %v98 = vld [vmem:[#allocation5 + $0x1a8] sm:$0xff]
    %v99 = vld [vmem:[#allocation5 + $0x1b0] sm:$0xff]
    %v100 = vld [vmem:[#allocation5 + $0x1b8] sm:$0xff]
    %v101 = vld [vmem:[#allocation5 + $0x1c0] sm:$0xff]
    %v102 = vld [vmem:[#allocation5 + $0x1c8] sm:$0xff]
    %v103 = vld [vmem:[#allocation5 + $0x1d0] sm:$0xff]
    %v104 = vld [vmem:[#allocation5 + $0x1d8] sm:$0xff]
    %v105 = vld [vmem:[#allocation5 + $0x1e0] sm:$0xff]
    %v106 = vld [vmem:[#allocation5 + $0x1e8] sm:$0xff]
    %v107 = vld [vmem:[#allocation5 + $0x1f0] sm:$0xff]
    %v108 = vld [vmem:[#allocation5 + $0x1f8] sm:$0xff]
    %v111 = vunpack.c.l.b16 %v43
    %v112 = vunpack.c.h.b16 %v43
    %v113 = vunpack.c.l.b16 %v44
    %v114 = vunpack.c.h.b16 %v44
    %v115 = vpack.c.b16 %v113, %v111
    %v116 = vpack.c.b16 %v114, %v112
    %v183 = vunpack.c.l.b16 %v45
    %v184 = vunpack.c.h.b16 %v45
    %v185 = vunpack.c.l.b16 %v46
    %v186 = vunpack.c.h.b16 %v46
    %v187 = vunpack.c.l.b16 %v47
    %v188 = vunpack.c.h.b16 %v47
    %v189 = vunpack.c.l.b16 %v48
    %v190 = vunpack.c.h.b16 %v48
    %v191 = vunpack.c.l.b16 %v49
    %v192 = vunpack.c.h.b16 %v49
    %v193 = vunpack.c.l.b16 %v50
    %v194 = vunpack.c.h.b16 %v50
    %v195 = vunpack.c.l.b16 %v51
    %v196 = vunpack.c.h.b16 %v51
    %v197 = vunpack.c.l.b16 %v52
    %v198 = vunpack.c.h.b16 %v52
    %v199 = vunpack.c.l.b16 %v53
    %v200 = vunpack.c.h.b16 %v53
    %v201 = vunpack.c.l.b16 %v54
    %v202 = vunpack.c.h.b16 %v54
    %v203 = vunpack.c.l.b16 %v55
    %v204 = vunpack.c.h.b16 %v55
    %v205 = vunpack.c.l.b16 %v56
    %v206 = vunpack.c.h.b16 %v56
    %v207 = vunpack.c.l.b16 %v57
    %v208 = vunpack.c.h.b16 %v57
    %v209 = vunpack.c.l.b16 %v58
    %v210 = vunpack.c.h.b16 %v58
    %v211 = vunpack.c.l.b16 %v59
    %v212 = vunpack.c.h.b16 %v59
    %v213 = vunpack.c.l.b16 %v60
    %v214 = vunpack.c.h.b16 %v60
    %v215 = vunpack.c.l.b16 %v61
    %v216 = vunpack.c.h.b16 %v61
    %v217 = vunpack.c.l.b16 %v62
    %v218 = vunpack.c.h.b16 %v62
    %v219 = vunpack.c.l.b16 %v63
    %v220 = vunpack.c.h.b16 %v63
    %v221 = vunpack.c.l.b16 %v64
    %v222 = vunpack.c.h.b16 %v64
    %v223 = vunpack.c.l.b16 %v65
    %v224 = vunpack.c.h.b16 %v65
    %v225 = vunpack.c.l.b16 %v66
    %v226 = vunpack.c.h.b16 %v66
    %v227 = vunpack.c.l.b16 %v67
    %v228 = vunpack.c.h.b16 %v67
    %v229 = vunpack.c.l.b16 %v68
    %v230 = vunpack.c.h.b16 %v68
    %v231 = vunpack.c.l.b16 %v69
    %v232 = vunpack.c.h.b16 %v69
    %v233 = vunpack.c.l.b16 %v70
    %v234 = vunpack.c.h.b16 %v70
    %v235 = vunpack.c.l.b16 %v71
    %v236 = vunpack.c.h.b16 %v71
    %v237 = vunpack.c.l.b16 %v72
    %v238 = vunpack.c.h.b16 %v72
    %v239 = vunpack.c.l.b16 %v73
    %v240 = vunpack.c.h.b16 %v73
    %v241 = vunpack.c.l.b16 %v74
    %v242 = vunpack.c.h.b16 %v74
    %v243 = vunpack.c.l.b16 %v75
    %v244 = vunpack.c.h.b16 %v75
    %v245 = vunpack.c.l.b16 %v76
    %v246 = vunpack.c.h.b16 %v76
    %v247 = vunpack.c.l.b16 %v77
    %v248 = vunpack.c.h.b16 %v77
    %v249 = vunpack.c.l.b16 %v78
    %v250 = vunpack.c.h.b16 %v78
    %v251 = vunpack.c.l.b16 %v79
    %v252 = vunpack.c.h.b16 %v79
    %v253 = vunpack.c.l.b16 %v80
    %v254 = vunpack.c.h.b16 %v80
    %v255 = vunpack.c.l.b16 %v81
    %v256 = vunpack.c.h.b16 %v81
    %v257 = vunpack.c.l.b16 %v82
    %v258 = vunpack.c.h.b16 %v82
    %v259 = vunpack.c.l.b16 %v83
    %v260 = vunpack.c.h.b16 %v83
    %v261 = vunpack.c.l.b16 %v84
    %v262 = vunpack.c.h.b16 %v84
    %v263 = vunpack.c.l.b16 %v85
    %v264 = vunpack.c.h.b16 %v85
    %v265 = vunpack.c.l.b16 %v86
    %v266 = vunpack.c.h.b16 %v86
    %v267 = vunpack.c.l.b16 %v87
    %v268 = vunpack.c.h.b16 %v87
    %v269 = vunpack.c.l.b16 %v88
    %v270 = vunpack.c.h.b16 %v88
    %v271 = vunpack.c.l.b16 %v89
    %v272 = vunpack.c.h.b16 %v89
    %v273 = vunpack.c.l.b16 %v90
    %v274 = vunpack.c.h.b16 %v90
    %v275 = vunpack.c.l.b16 %v91
    %v276 = vunpack.c.h.b16 %v91
    %v277 = vunpack.c.l.b16 %v92
    %v278 = vunpack.c.h.b16 %v92
    %v279 = vunpack.c.l.b16 %v93
    %v280 = vunpack.c.h.b16 %v93
    %v281 = vunpack.c.l.b16 %v94
    %v282 = vunpack.c.h.b16 %v94
    %v283 = vunpack.c.l.b16 %v95
    %v284 = vunpack.c.h.b16 %v95
    %v285 = vunpack.c.l.b16 %v96
    %v286 = vunpack.c.h.b16 %v96
    %v287 = vunpack.c.l.b16 %v97
    %v288 = vunpack.c.h.b16 %v97
    %v289 = vunpack.c.l.b16 %v98
    %v290 = vunpack.c.h.b16 %v98
    %v291 = vunpack.c.l.b16 %v99
    %v292 = vunpack.c.h.b16 %v99
    %v293 = vunpack.c.l.b16 %v100
    %v294 = vunpack.c.h.b16 %v100
    %v295 = vunpack.c.l.b16 %v101
    %v296 = vunpack.c.h.b16 %v101
    %v297 = vunpack.c.l.b16 %v102
    %v298 = vunpack.c.h.b16 %v102
    %v299 = vunpack.c.l.b16 %v103
    %v300 = vunpack.c.h.b16 %v103
    %v301 = vunpack.c.l.b16 %v104
    %v302 = vunpack.c.h.b16 %v104
    %v303 = vunpack.c.l.b16 %v105
    %v304 = vunpack.c.h.b16 %v105
    %v305 = vunpack.c.l.b16 %v106
    %v306 = vunpack.c.h.b16 %v106
    %v307 = vunpack.c.l.b16 %v107
    %v308 = vunpack.c.h.b16 %v107
    %v309 = vunpack.c.l.b16 %v108
    %v310 = vunpack.c.h.b16 %v108
    %v311 = vpack.c.b16 %v187, %v183
    %v312 = vpack.c.b16 %v188, %v184
    %v313 = vpack.c.b16 %v189, %v185
    %v314 = vpack.c.b16 %v190, %v186
    %v315 = vpack.c.b16 %v195, %v191
    %v316 = vpack.c.b16 %v196, %v192
    %v317 = vpack.c.b16 %v197, %v193
    %v318 = vpack.c.b16 %v198, %v194
    %v319 = vpack.c.b16 %v203, %v199
    %v320 = vpack.c.b16 %v204, %v200
    %v321 = vpack.c.b16 %v205, %v201
    %v322 = vpack.c.b16 %v206, %v202
    %v323 = vpack.c.b16 %v211, %v207
    %v324 = vpack.c.b16 %v212, %v208
    %v325 = vpack.c.b16 %v213, %v209
    %v326 = vpack.c.b16 %v214, %v210
    %v327 = vpack.c.b16 %v219, %v215
    %v328 = vpack.c.b16 %v220, %v216
    %v329 = vpack.c.b16 %v221, %v217
    %v330 = vpack.c.b16 %v222, %v218
    %v331 = vpack.c.b16 %v227, %v223
    %v332 = vpack.c.b16 %v228, %v224
    %v333 = vpack.c.b16 %v229, %v225
    %v334 = vpack.c.b16 %v230, %v226
    %v335 = vpack.c.b16 %v235, %v231
    %v336 = vpack.c.b16 %v236, %v232
    %v337 = vpack.c.b16 %v237, %v233
    %v338 = vpack.c.b16 %v238, %v234
    %v339 = vpack.c.b16 %v243, %v239
    %v340 = vpack.c.b16 %v244, %v240
    %v341 = vpack.c.b16 %v245, %v241
    %v342 = vpack.c.b16 %v246, %v242
    %v343 = vpack.c.b16 %v251, %v247
    %v344 = vpack.c.b16 %v252, %v248
    %v345 = vpack.c.b16 %v253, %v249
    %v346 = vpack.c.b16 %v254, %v250
    %v347 = vpack.c.b16 %v259, %v255
    %v348 = vpack.c.b16 %v260, %v256
    %v349 = vpack.c.b16 %v261, %v257
    %v350 = vpack.c.b16 %v262, %v258
    %v351 = vpack.c.b16 %v267, %v263
    %v352 = vpack.c.b16 %v268, %v264
    %v353 = vpack.c.b16 %v269, %v265
    %v354 = vpack.c.b16 %v270, %v266
    %v355 = vpack.c.b16 %v275, %v271
    %v356 = vpack.c.b16 %v276, %v272
    %v357 = vpack.c.b16 %v277, %v273
    %v358 = vpack.c.b16 %v278, %v274
    %v359 = vpack.c.b16 %v283, %v279
    %v360 = vpack.c.b16 %v284, %v280
    %v361 = vpack.c.b16 %v285, %v281
    %v362 = vpack.c.b16 %v286, %v282
    %v363 = vpack.c.b16 %v291, %v287
    %v364 = vpack.c.b16 %v292, %v288
    %v365 = vpack.c.b16 %v293, %v289
    %v366 = vpack.c.b16 %v294, %v290
    %v367 = vpack.c.b16 %v299, %v295
    %v368 = vpack.c.b16 %v300, %v296
    %v369 = vpack.c.b16 %v301, %v297
    %v370 = vpack.c.b16 %v302, %v298
    %v371 = vpack.c.b16 %v307, %v303
    %v372 = vpack.c.b16 %v308, %v304
    %v373 = vpack.c.b16 %v309, %v305
    %v374 = vpack.c.b16 %v310, %v306
    %439 = vmatprep.subr.bf16.mxu0 %v312
    %440 = vmatpush1.bf16.msra.mxu0 %v311
    %441 = vmatprep.subr.bf16.mxu0 %v316
    %442 = vmatpush1.bf16.msra.mxu0 %v315
    %443 = vmatprep.subr.bf16.mxu0 %v320
    %444 = vmatpush1.bf16.msra.mxu0 %v319
    %445 = vmatprep.subr.bf16.mxu0 %v324
    %446 = vmatpush1.bf16.msra.mxu0 %v323
    %447 = vmatprep.subr.bf16.mxu0 %v328
    %448 = vmatpush1.bf16.msra.mxu0 %v327
    %449 = vmatprep.subr.bf16.mxu0 %v332
    %450 = vmatpush1.bf16.msra.mxu0 %v331
    %451 = vmatprep.subr.bf16.mxu0 %v336
    %452 = vmatpush1.bf16.msra.mxu0 %v335
    %453 = vmatprep.subr.bf16.mxu0 %v340
    %454 = vmatpush1.bf16.msra.mxu0 %v339
    %455 = vmatprep.subr.bf16.mxu0 %v344
    %456 = vmatpush1.bf16.msra.mxu0 %v343
    %457 = vmatprep.subr.bf16.mxu0 %v348
    %458 = vmatpush1.bf16.msra.mxu0 %v347
    %459 = vmatprep.subr.bf16.mxu0 %v352
    %460 = vmatpush1.bf16.msra.mxu0 %v351
    %461 = vmatprep.subr.bf16.mxu0 %v356
    %462 = vmatpush1.bf16.msra.mxu0 %v355
    %463 = vmatprep.subr.bf16.mxu0 %v360
    %464 = vmatpush1.bf16.msra.mxu0 %v359
    %465 = vmatprep.subr.bf16.mxu0 %v364
    %466 = vmatpush1.bf16.msra.mxu0 %v363
    %467 = vmatprep.subr.bf16.mxu0 %v368
    %468 = vmatpush1.bf16.msra.mxu0 %v367
    %469 = vmatprep.subr.bf16.mxu0 %v372
    %470 = vmatpush1.bf16.msra.mxu0 %v371
    %471 = vmatprep.mubr.bf16.mxu0 %v116
    %472 = vmatmul.mubr.bf16.gmra.mrb[0].mxu0 %v115
    %v473 = vpop.f32.mrb[0].mxu0
    %v474 = vadd.f32 0.0, %v473
    %v475 = vpop.f32.mrb[0].mxu0
    %v476 = vadd.f32 0.0, %v475
    %v477 = vpop.f32.mrb[0].mxu0
    %v478 = vadd.f32 0.0, %v477
    %v479 = vpop.f32.mrb[0].mxu0
    %v480 = vadd.f32 0.0, %v479
    %481 = vdwg.mxu0
    %482 = vmatprep.subr.bf16.mxu0 %v314
    %483 = vmatpush1.bf16.msra.mxu0 %v313
    %484 = vmatprep.subr.bf16.mxu0 %v318
    %485 = vmatpush1.bf16.msra.mxu0 %v317
    %486 = vmatprep.subr.bf16.mxu0 %v322
    %487 = vmatpush1.bf16.msra.mxu0 %v321
    %488 = vmatprep.subr.bf16.mxu0 %v326
    %489 = vmatpush1.bf16.msra.mxu0 %v325
    %490 = vmatprep.subr.bf16.mxu0 %v330
    %491 = vmatpush1.bf16.msra.mxu0 %v329
    %492 = vmatprep.subr.bf16.mxu0 %v334
    %493 = vmatpush1.bf16.msra.mxu0 %v333
    %494 = vmatprep.subr.bf16.mxu0 %v338
    %495 = vmatpush1.bf16.msra.mxu0 %v337
    %496 = vmatprep.subr.bf16.mxu0 %v342
    %497 = vmatpush1.bf16.msra.mxu0 %v341
    %498 = vmatprep.subr.bf16.mxu0 %v346
    %499 = vmatpush1.bf16.msra.mxu0 %v345
    %500 = vmatprep.subr.bf16.mxu0 %v350
    %501 = vmatpush1.bf16.msra.mxu0 %v349
    %502 = vmatprep.subr.bf16.mxu0 %v354
    %503 = vmatpush1.bf16.msra.mxu0 %v353
    %504 = vmatprep.subr.bf16.mxu0 %v358
    %505 = vmatpush1.bf16.msra.mxu0 %v357
    %506 = vmatprep.subr.bf16.mxu0 %v362
    %507 = vmatpush1.bf16.msra.mxu0 %v361
    %508 = vmatprep.subr.bf16.mxu0 %v366
    %509 = vmatpush1.bf16.msra.mxu0 %v365
    %510 = vmatprep.subr.bf16.mxu0 %v370
    %511 = vmatpush1.bf16.msra.mxu0 %v369
    %512 = vmatprep.subr.bf16.mxu0 %v374
    %513 = vmatpush1.bf16.msra.mxu0 %v373
    %514 = vmatprep.mubr.bf16.mxu0 %v116
    %515 = vmatmul.mubr.bf16.gmra.mrb[0].mxu0 %v115
    %v516 = vpop.f32.mrb[0].mxu0
    %v517 = vadd.f32 0.0, %v516
    %v518 = vpop.f32.mrb[0].mxu0
    %v519 = vadd.f32 0.0, %v518
    %v520 = vpop.f32.mrb[0].mxu0
    %v521 = vadd.f32 0.0, %v520
    %v522 = vpop.f32.mrb[0].mxu0
    %v523 = vadd.f32 0.0, %v522
    %524 = vdwg.mxu0
    %v525 = vld [vmem:[%s2] sm:$0xf]
    %v527 = vlaneseq
    %v528 = vshrl.u32 %v527, 7
    %v529 = vsub.s32 0, %v528
    %v530 = vrot.slane %v525, %v529
    %v531 = vlaneseq
    %v532 = vshrl.u32 %v531, 7
    %v533 = vsub.s32 1, %v532
    %v534 = vrot.slane %v525, %v533
    %v535 = vlaneseq
    %v536 = vshrl.u32 %v535, 7
    %v537 = vsub.s32 2, %v536
    %v538 = vrot.slane %v525, %v537
    %v539 = vlaneseq
    %v540 = vshrl.u32 %v539, 7
    %v541 = vsub.s32 3, %v540
    %v542 = vrot.slane %v525, %v541
    %v547 = vmul.f32 %v474, %v530
    %v548 = vmul.f32 %v476, %v534
    %v549 = vmul.f32 %v517, %v538
    %v550 = vmul.f32 %v519, %v542
    %v551 = vmul.f32 %v478, %v530
    %v552 = vmul.f32 %v480, %v534
    %v553 = vmul.f32 %v521, %v538
    %v554 = vmul.f32 %v523, %v542
    %555 = vst [vmem:[#allocation7] sm:$0xff] %v547
    %556 = vst [vmem:[#allocation7 + $0x8] sm:$0xff] %v548
    %557 = vst [vmem:[#allocation7 + $0x10] sm:$0xff] %v549
    %558 = vst [vmem:[#allocation7 + $0x18] sm:$0xff] %v550
    %559 = vst [vmem:[#allocation7 + $0x20] sm:$0xff] %v551
    %560 = vst [vmem:[#allocation7 + $0x28] sm:$0xff] %v552
    %561 = vst [vmem:[#allocation7 + $0x30] sm:$0xff] %v553
    %562 = vst [vmem:[#allocation7 + $0x38] sm:$0xff] %v554
    // Predicated region
    $region22: #{tpu_custom_call.1} parent=1 // pred_check
      _
    $region23: #{tpu_custom_call.1} parent=1 // pred_check_branch
      %564 = sbr.rel (0) target = $region25
    $region24: #{tpu_custom_call.1} parent=1 // pred_region
      %s566 = ssub.s32 1024, 1024
      %567 = vsyncadd [#allocation4], %s566
      %s568 = sshll.u32 [#allocation7], 4
      %s569 = int_to_ptr.vmem [resolvable:$true] %s568
      %574 = dma.vmem_to_hbm [thread:$0]  %s569, 1024, %s3, [#allocation4], 512, 512, 32
    $region25: #{tpu_custom_call.1} parent=1 // pred_fallthru
      _
    // Predicated region
    $region26: #{tpu_custom_call.1} parent=1 // pred_check
      _
    $region27: #{tpu_custom_call.1} parent=1 // pred_check_branch
      %576 = sbr.rel (0) target = $region29
    $region28: #{tpu_custom_call.1} parent=1 // pred_region
      %577 = dma.done [#allocation4], 1024
    $region29: #{tpu_custom_call.1} parent=1 // pred_fallthru
      _
    %578 = vsyncpa [#allocation3], 1
    %579 = vsyncpa [#allocation6], 1
    %580 = vsyncpa [#allocation4], 1

</llo_original>
